<compile_context>
chip_gen: v7x
topology: tpu7x:2x2x1
jax: 0.10.0
libtpu: 0.0.40
codegen_flags: <defaults>
</compile_context>

<pallas_src>
import functools

import numpy as np
import jax
import jax.numpy as jnp
from jax.experimental import pallas as pl
from jax.experimental.pallas import tpu as pltpu


# ----------------------------------------------------------------------------
# Fused decoder kernel (whole batch folded into the lane axis)
# ----------------------------------------------------------------------------
def _decoder_kernel(*refs, num_blocks, K):
    """refs = [x, w0, b0, (wfg, bfg, wo, bo, sel) * num_blocks, out]."""
    x_ref, w0_ref, b0_ref = refs[0], refs[1], refs[2]
    o_ref = refs[-1]

    # Initial 1x1 ConvBlock: (C0, Cin) @ (Cin, B*L0) + b, then ReLU.
    h = jnp.dot(w0_ref[...], x_ref[...].astype(jnp.bfloat16),
                preferred_element_type=jnp.float32) + b0_ref[...]
    h = jnp.maximum(h, 0.0)                                  # f32 elementwise

    for i in range(num_blocks):
        wfg_ref, bfg_ref, wo_ref, bo_ref, sel_ref = refs[3 + 5 * i: 8 + 5 * i]
        ch2 = bfg_ref.shape[0]            # 2 * hidden channels
        ch = ch2 // 2
        l_out = sel_ref.shape[2]          # B * (2 * l_in)

        # ONE merged weight dot for all K taps of both filter & gate convs:
        # (K*2Ch, Cin) @ (Cin, B*Lin) -> (K*2Ch, B*Lin), f32 accumulation.
        hb = h.astype(jnp.bfloat16)
        ybig = jnp.dot(wfg_ref[...], hb, preferred_element_type=jnp.float32)

        # Upsample + 'same' pad + tap-shift via precomputed 0/1 selection
        # matrices (block-diagonal over the folded batch, VMEM-resident).
        acc = jnp.zeros((ch2, l_out), jnp.float32)
        for k in range(K):                                   # K small & static
            yk = ybig[k * ch2:(k + 1) * ch2, :].astype(jnp.bfloat16)
            acc = acc + jnp.dot(yk, sel_ref[k],
                                preferred_element_type=jnp.float32)

        g = acc + bfg_ref[...]                               # (2Ch, B*Lout)
        gated = jnp.tanh(g[:ch, :]) * jax.nn.sigmoid(g[ch:, :])   # f32 VPU/EUP
        # 1x1 output projection.
        h = jnp.dot(wo_ref[...], gated.astype(jnp.bfloat16),
                    preferred_element_type=jnp.float32) + bo_ref[...]

    o_ref[...] = h.astype(o_ref.dtype)


# ----------------------------------------------------------------------------
# Host-side helpers
# ----------------------------------------------------------------------------
def _const_spec(arr):
    nd = arr.ndim
    return pl.BlockSpec(arr.shape, lambda g, _nd=nd: (0,) * _nd)


def _make_sel(l_in, K, pad, batch):
    """(K, batch*l_in, batch*2*l_in) bf16 block-diagonal selection matrices.

    S_k[j, t] = 1 iff (t + k - pad) is in range and its nearest-neighbour
    source index (t + k - pad) // 2 == j.  Built with numpy at trace time so
    no iota/compare/select work ever runs on the VPU.
    """
    l_out = 2 * l_in
    j = np.arange(l_in)[:, None]
    t = np.arange(l_out)[None, :]
    sels = []
    for k in range(K):
        src = t + (k - pad)
        valid = (src >= 0) & (src < l_out)
        sels.append((valid & (j == src // 2)).astype(np.float32))
    s = np.stack(sels)                                        # (K, Lin, Lout)
    s = np.kron(np.eye(batch, dtype=np.float32), s)           # block-diag batch
    return jnp.asarray(s, dtype=jnp.bfloat16)                 # 0/1 exact in bf16


# ----------------------------------------------------------------------------
# Wrapper (single pallas_call for the whole decoder)
# ----------------------------------------------------------------------------
def decoder_forward(x_ncw, params, *, kernel_size, grid_splits=1):
    """x_ncw: (N, Cin, L) -> (N, out_channels, L * 2**num_blocks), NCW."""
    N, Cin, L0 = x_ncw.shape
    K = int(kernel_size)
    assert K % 2 == 1, "pad = K//2 'same' padding only matches PyTorch for odd K"
    pad = K // 2
    blocks = params["blocks"]
    num_blocks = len(blocks)
    G = int(grid_splits)                 # set 2 on v7x once N*L0 allows it
    assert N % G == 0
    Bp = N // G                          # batch elements folded per grid step
    L_final = L0 * (2 ** num_blocks)
    C_final = blocks[-1]["wo"].shape[0]

    # Fold batch into the lane axis: (N, Cin, L0) -> (Cin, N*L0).
    x2d = jnp.transpose(x_ncw, (1, 0, 2)).reshape(Cin, N * L0)

    args = [x2d, params["w0"], params["b0"]]
    in_specs = [pl.BlockSpec((Cin, Bp * L0), lambda g: (0, g)),
                _const_spec(params["w0"]),
                _const_spec(params["b0"])]

    l_in = L0
    for blk in blocks:
        sel = _make_sel(l_in, K, pad, Bp)
        for a in (blk["wfg"], blk["bfg"], blk["wo"], blk["bo"], sel):
            args.append(a)
            in_specs.append(_const_spec(a))
        l_in *= 2

    kernel = functools.partial(_decoder_kernel, num_blocks=num_blocks, K=K)
    out2d = pl.pallas_call(
        kernel,
        out_shape=jax.ShapeDtypeStruct((C_final, N * L_final), x_ncw.dtype),
        grid_spec=pltpu.PrefetchScalarGridSpec(
            num_scalar_prefetch=0,
            grid=(G,),
            in_specs=in_specs,
            out_specs=pl.BlockSpec((C_final, Bp * L_final), lambda g: (0, g)),
        ),
        compiler_params=pltpu.CompilerParams(
            dimension_semantics=("parallel",)),
    )(*args)

    # Un-fold the batch: (C_final, N*L_final) -> (N, C_final, L_final).
    return jnp.transpose(out2d.reshape(C_final, N, L_final), (1, 0, 2))


# ----------------------------------------------------------------------------
# Parameter construction (deterministic, in-script, kernel-layout weights)
# ----------------------------------------------------------------------------
def _init_conv(key, K, cin, cout):
    kw, kb = jax.random.split(key)
    scale = 1.0 / jnp.sqrt(jnp.float32(K * cin))
    w = jax.random.normal(kw, (K, cout, cin), jnp.float32) * scale
    b = jax.random.normal(kb, (cout, 1), jnp.float32) * 0.01
    return w, b


def _init_wavenet(key, K, cin, cout):
    k1, k2, k3 = jax.random.split(key, 3)
    wf, bf = _init_conv(k1, K, cin, cout)
    wg, bg = _init_conv(k2, K, cin, cout)
    wo, bo = _init_conv(k3, 1, cout, cout)
    # Merge filter & gate weights and flatten taps into rows:
    # (K, 2*cout, cin) -> (K*2*cout, cin); bf16 for the MXU, biases stay f32.
    wfg = jnp.concatenate([wf, wg], axis=1).reshape(K * 2 * cout, cin)
    return {"wfg": wfg.astype(jnp.bfloat16),                  # (K*2*cout, cin)
            "bfg": jnp.concatenate([bf, bg], axis=0),         # (2*cout, 1) f32
            "wo": wo[0].astype(jnp.bfloat16),                 # (cout, cout)
            "bo": bo}                                         # (cout, 1) f32


def init_decoder_params(key, in_channels, channels_list, out_channels,
                        kernel_size):
    keys = jax.random.split(key, len(channels_list) + 1)
    w0, b0 = _init_conv(keys[0], 1, in_channels, channels_list[0])
    blocks = []
    for i in range(len(channels_list) - 1):
        blocks.append(_init_wavenet(keys[1 + i], kernel_size,
                                    channels_list[i], channels_list[i + 1]))
    blocks.append(_init_wavenet(keys[-1], kernel_size, channels_list[-1],
                                out_channels))
    # kernel_size stays a static Python int (never a pytree leaf).
    return {"w0": w0[0].astype(jnp.bfloat16), "b0": b0, "blocks": blocks}


# ----------------------------------------------------------------------------
# Main
# ----------------------------------------------------------------------------
if __name__ == "__main__":
    batch = 2
    in_channels = 8
    channels_list = [16, 8]
    out_channels = 4
    seq_len = 8
    kernel_size = 3

    key = jax.random.PRNGKey(0)
    k_x, k_p = jax.random.split(key)
    x = jax.random.normal(k_x, (batch, in_channels, seq_len), jnp.float32)
    params = init_decoder_params(k_p, in_channels, channels_list,
                                 out_channels, kernel_size)

    fwd = jax.jit(decoder_forward,
                  static_argnames=("kernel_size", "grid_splits"))
    out = fwd(x, params, kernel_size=kernel_size, grid_splits=1)
    out = jax.block_until_ready(out)

    # 2 upsamples total (1 up_block + final) -> seq_len * 4, NCW output.
    expected_shape = (batch, out_channels,
                      seq_len * (2 ** len(channels_list)))
    assert out.shape == expected_shape, (out.shape, expected_shape)
    assert bool(jnp.all(jnp.isfinite(out)))
    print("KERNEL_OK")
</pallas_src>

<mosaic_0001>
module attributes {stable_mosaic.version = 11 : i64} {
  func.func @_decoder_kernel(%arg0: i32, %arg1: memref<8x16xf32, #tpu.memory_space<vmem>>, %arg2: memref<16x8xbf16, #tpu.memory_space<vmem>>, %arg3: memref<16x1xf32, #tpu.memory_space<vmem>>, %arg4: memref<48x16xbf16, #tpu.memory_space<vmem>>, %arg5: memref<16x1xf32, #tpu.memory_space<vmem>>, %arg6: memref<8x8xbf16, #tpu.memory_space<vmem>>, %arg7: memref<8x1xf32, #tpu.memory_space<vmem>>, %arg8: memref<3x16x32xbf16, #tpu.memory_space<vmem>>, %arg9: memref<24x8xbf16, #tpu.memory_space<vmem>>, %arg10: memref<8x1xf32, #tpu.memory_space<vmem>>, %arg11: memref<4x4xbf16, #tpu.memory_space<vmem>>, %arg12: memref<4x1xf32, #tpu.memory_space<vmem>>, %arg13: memref<3x32x64xbf16, #tpu.memory_space<vmem>>, %arg14: memref<4x64xf32, #tpu.memory_space<vmem>>) attributes {dimension_semantics = [#tpu.dimension_semantics<parallel>], iteration_bounds = array<i64: 1>, scalar_prefetch = 0 : i64, scratch_operands = 0 : i64, tpu.core_type = #tpu.core_type<tc>, window_params = [{transform_indices = @transform_0, window_bounds = array<i64: 8, 16>}, {pipeline_mode = #tpu.pipeline_mode<synchronous>, transform_indices = @transform_1, window_bounds = array<i64: 16, 8>}, {pipeline_mode = #tpu.pipeline_mode<synchronous>, transform_indices = @transform_2, window_bounds = array<i64: 16, 1>}, {pipeline_mode = #tpu.pipeline_mode<synchronous>, transform_indices = @transform_3, window_bounds = array<i64: 48, 16>}, {pipeline_mode = #tpu.pipeline_mode<synchronous>, transform_indices = @transform_4, window_bounds = array<i64: 16, 1>}, {pipeline_mode = #tpu.pipeline_mode<synchronous>, transform_indices = @transform_5, window_bounds = array<i64: 8, 8>}, {pipeline_mode = #tpu.pipeline_mode<synchronous>, transform_indices = @transform_6, window_bounds = array<i64: 8, 1>}, {pipeline_mode = #tpu.pipeline_mode<synchronous>, transform_indices = @transform_7, window_bounds = array<i64: 3, 16, 32>}, {pipeline_mode = #tpu.pipeline_mode<synchronous>, transform_indices = @transform_8, window_bounds = array<i64: 24, 8>}, {pipeline_mode = #tpu.pipeline_mode<synchronous>, transform_indices = @transform_9, window_bounds = array<i64: 8, 1>}, {pipeline_mode = #tpu.pipeline_mode<synchronous>, transform_indices = @transform_10, window_bounds = array<i64: 4, 4>}, {pipeline_mode = #tpu.pipeline_mode<synchronous>, transform_indices = @transform_11, window_bounds = array<i64: 4, 1>}, {pipeline_mode = #tpu.pipeline_mode<synchronous>, transform_indices = @transform_12, window_bounds = array<i64: 3, 32, 64>}, {transform_indices = @transform_13, window_bounds = array<i64: 4, 64>}]} {
    %c0 = arith.constant 0 : index
    %c0_0 = arith.constant 0 : index
    %0 = vector.load %arg2[%c0, %c0_0] : memref<16x8xbf16, #tpu.memory_space<vmem>>, vector<16x8xbf16>
    %c0_1 = arith.constant 0 : index
    %c0_2 = arith.constant 0 : index
    %1 = vector.load %arg1[%c0_1, %c0_2] : memref<8x16xf32, #tpu.memory_space<vmem>>, vector<8x16xf32>
    %2 = arith.truncf %1 : vector<8x16xf32> to vector<8x16xbf16>
    %cst = arith.constant dense<0.000000e+00> : vector<16x16xf32>
    %3 = tpu.matmul %0, %2, %cst {dimension_numbers = #tpu.dot_dimension_numbers<[1], [0], [0], [1], [0, 0, 1, 1], [], []>} : vector<16x8xbf16>, vector<8x16xbf16>, vector<16x16xf32> -> vector<16x16xf32>
    %c0_3 = arith.constant 0 : index
    %c0_4 = arith.constant 0 : index
    %4 = vector.load %arg3[%c0_3, %c0_4] : memref<16x1xf32, #tpu.memory_space<vmem>>, vector<16x1xf32>
    %5 = vector.broadcast %4 : vector<16x1xf32> to vector<16x16xf32>
    %6 = arith.addf %3, %5 : vector<16x16xf32>
    %cst_5 = arith.constant 0.000000e+00 : f32
    %7 = vector.broadcast %cst_5 : f32 to vector<16x16xf32>
    %8 = arith.maximumf %6, %7 : vector<16x16xf32>
    %9 = arith.truncf %8 : vector<16x16xf32> to vector<16x16xbf16>
    %c0_6 = arith.constant 0 : index
    %c0_7 = arith.constant 0 : index
    %10 = vector.load %arg4[%c0_6, %c0_7] : memref<48x16xbf16, #tpu.memory_space<vmem>>, vector<48x16xbf16>
    %cst_8 = arith.constant dense<0.000000e+00> : vector<48x16xf32>
    %11 = tpu.matmul %10, %9, %cst_8 {dimension_numbers = #tpu.dot_dimension_numbers<[1], [0], [0], [1], [0, 0, 1, 1], [], []>} : vector<48x16xbf16>, vector<16x16xbf16>, vector<48x16xf32> -> vector<48x16xf32>
    %cst_9 = arith.constant 0.000000e+00 : f32
    %12 = vector.broadcast %cst_9 : f32 to vector<16x32xf32>
    %13 = vector.extract_strided_slice %11 {offsets = [0, 0], sizes = [16, 16], strides = [1, 1]} : vector<48x16xf32> to vector<16x16xf32>
    %14 = arith.truncf %13 : vector<16x16xf32> to vector<16x16xbf16>
    %c0_10 = arith.constant 0 : index
    %c0_11 = arith.constant 0 : index
    %c0_12 = arith.constant 0 : index
    %15 = vector.load %arg8[%c0_10, %c0_11, %c0_12] : memref<3x16x32xbf16, #tpu.memory_space<vmem>>, vector<1x16x32xbf16>
    %16 = vector.shape_cast %15 : vector<1x16x32xbf16> to vector<16x32xbf16>
    %cst_13 = arith.constant dense<0.000000e+00> : vector<16x32xf32>
    %17 = tpu.matmul %14, %16, %cst_13 {dimension_numbers = #tpu.dot_dimension_numbers<[1], [0], [0], [1], [0, 0, 1, 1], [], []>} : vector<16x16xbf16>, vector<16x32xbf16>, vector<16x32xf32> -> vector<16x32xf32>
    %18 = arith.addf %12, %17 : vector<16x32xf32>
    %19 = vector.extract_strided_slice %11 {offsets = [16, 0], sizes = [16, 16], strides = [1, 1]} : vector<48x16xf32> to vector<16x16xf32>
    %20 = arith.truncf %19 : vector<16x16xf32> to vector<16x16xbf16>
    %c1 = arith.constant 1 : index
    %c0_14 = arith.constant 0 : index
    %c0_15 = arith.constant 0 : index
    %21 = vector.load %arg8[%c1, %c0_14, %c0_15] : memref<3x16x32xbf16, #tpu.memory_space<vmem>>, vector<1x16x32xbf16>
    %22 = vector.shape_cast %21 : vector<1x16x32xbf16> to vector<16x32xbf16>
    %cst_16 = arith.constant dense<0.000000e+00> : vector<16x32xf32>
    %23 = tpu.matmul %20, %22, %cst_16 {dimension_numbers = #tpu.dot_dimension_numbers<[1], [0], [0], [1], [0, 0, 1, 1], [], []>} : vector<16x16xbf16>, vector<16x32xbf16>, vector<16x32xf32> -> vector<16x32xf32>
    %24 = arith.addf %18, %23 : vector<16x32xf32>
    %25 = vector.extract_strided_slice %11 {offsets = [32, 0], sizes = [16, 16], strides = [1, 1]} : vector<48x16xf32> to vector<16x16xf32>
    %26 = arith.truncf %25 : vector<16x16xf32> to vector<16x16xbf16>
    %c2 = arith.constant 2 : index
    %c0_17 = arith.constant 0 : index
    %c0_18 = arith.constant 0 : index
    %27 = vector.load %arg8[%c2, %c0_17, %c0_18] : memref<3x16x32xbf16, #tpu.memory_space<vmem>>, vector<1x16x32xbf16>
    %28 = vector.shape_cast %27 : vector<1x16x32xbf16> to vector<16x32xbf16>
    %cst_19 = arith.constant dense<0.000000e+00> : vector<16x32xf32>
    %29 = tpu.matmul %26, %28, %cst_19 {dimension_numbers = #tpu.dot_dimension_numbers<[1], [0], [0], [1], [0, 0, 1, 1], [], []>} : vector<16x16xbf16>, vector<16x32xbf16>, vector<16x32xf32> -> vector<16x32xf32>
    %30 = arith.addf %24, %29 : vector<16x32xf32>
    %c0_20 = arith.constant 0 : index
    %c0_21 = arith.constant 0 : index
    %31 = vector.load %arg5[%c0_20, %c0_21] : memref<16x1xf32, #tpu.memory_space<vmem>>, vector<16x1xf32>
    %32 = vector.broadcast %31 : vector<16x1xf32> to vector<16x32xf32>
    %33 = arith.addf %30, %32 : vector<16x32xf32>
    %34 = vector.extract_strided_slice %33 {offsets = [0, 0], sizes = [8, 32], strides = [1, 1]} : vector<16x32xf32> to vector<8x32xf32>
    %35 = math.tanh %34 : vector<8x32xf32>
    %36 = vector.extract_strided_slice %33 {offsets = [8, 0], sizes = [8, 32], strides = [1, 1]} : vector<16x32xf32> to vector<8x32xf32>
    %37 = arith.negf %36 : vector<8x32xf32>
    %38 = math.exp %37 : vector<8x32xf32>
    %cst_22 = arith.constant 1.000000e+00 : f32
    %39 = vector.broadcast %cst_22 : f32 to vector<8x32xf32>
    %40 = arith.addf %39, %38 : vector<8x32xf32>
    %41 = arith.divf %39, %40 : vector<8x32xf32>
    %42 = arith.mulf %35, %41 : vector<8x32xf32>
    %c0_23 = arith.constant 0 : index
    %c0_24 = arith.constant 0 : index
    %43 = vector.load %arg6[%c0_23, %c0_24] : memref<8x8xbf16, #tpu.memory_space<vmem>>, vector<8x8xbf16>
    %44 = arith.truncf %42 : vector<8x32xf32> to vector<8x32xbf16>
    %cst_25 = arith.constant dense<0.000000e+00> : vector<8x32xf32>
    %45 = tpu.matmul %43, %44, %cst_25 {dimension_numbers = #tpu.dot_dimension_numbers<[1], [0], [0], [1], [0, 0, 1, 1], [], []>} : vector<8x8xbf16>, vector<8x32xbf16>, vector<8x32xf32> -> vector<8x32xf32>
    %c0_26 = arith.constant 0 : index
    %c0_27 = arith.constant 0 : index
    %46 = vector.load %arg7[%c0_26, %c0_27] : memref<8x1xf32, #tpu.memory_space<vmem>>, vector<8x1xf32>
    %47 = vector.broadcast %46 : vector<8x1xf32> to vector<8x32xf32>
    %48 = arith.addf %45, %47 : vector<8x32xf32>
    %49 = arith.truncf %48 : vector<8x32xf32> to vector<8x32xbf16>
    %c0_28 = arith.constant 0 : index
    %c0_29 = arith.constant 0 : index
    %50 = vector.load %arg9[%c0_28, %c0_29] : memref<24x8xbf16, #tpu.memory_space<vmem>>, vector<24x8xbf16>
    %cst_30 = arith.constant dense<0.000000e+00> : vector<24x32xf32>
    %51 = tpu.matmul %50, %49, %cst_30 {dimension_numbers = #tpu.dot_dimension_numbers<[1], [0], [0], [1], [0, 0, 1, 1], [], []>} : vector<24x8xbf16>, vector<8x32xbf16>, vector<24x32xf32> -> vector<24x32xf32>
    %cst_31 = arith.constant 0.000000e+00 : f32
    %52 = vector.broadcast %cst_31 : f32 to vector<8x64xf32>
    %53 = vector.extract_strided_slice %51 {offsets = [0, 0], sizes = [8, 32], strides = [1, 1]} : vector<24x32xf32> to vector<8x32xf32>
    %54 = arith.truncf %53 : vector<8x32xf32> to vector<8x32xbf16>
    %c0_32 = arith.constant 0 : index
    %c0_33 = arith.constant 0 : index
    %c0_34 = arith.constant 0 : index
    %55 = vector.load %arg13[%c0_32, %c0_33, %c0_34] : memref<3x32x64xbf16, #tpu.memory_space<vmem>>, vector<1x32x64xbf16>
    %56 = vector.shape_cast %55 : vector<1x32x64xbf16> to vector<32x64xbf16>
    %cst_35 = arith.constant dense<0.000000e+00> : vector<8x64xf32>
    %57 = tpu.matmul %54, %56, %cst_35 {dimension_numbers = #tpu.dot_dimension_numbers<[1], [0], [0], [1], [0, 0, 1, 1], [], []>} : vector<8x32xbf16>, vector<32x64xbf16>, vector<8x64xf32> -> vector<8x64xf32>
    %58 = arith.addf %52, %57 : vector<8x64xf32>
    %59 = vector.extract_strided_slice %51 {offsets = [8, 0], sizes = [8, 32], strides = [1, 1]} : vector<24x32xf32> to vector<8x32xf32>
    %60 = arith.truncf %59 : vector<8x32xf32> to vector<8x32xbf16>
    %c1_36 = arith.constant 1 : index
    %c0_37 = arith.constant 0 : index
    %c0_38 = arith.constant 0 : index
    %61 = vector.load %arg13[%c1_36, %c0_37, %c0_38] : memref<3x32x64xbf16, #tpu.memory_space<vmem>>, vector<1x32x64xbf16>
    %62 = vector.shape_cast %61 : vector<1x32x64xbf16> to vector<32x64xbf16>
    %cst_39 = arith.constant dense<0.000000e+00> : vector<8x64xf32>
    %63 = tpu.matmul %60, %62, %cst_39 {dimension_numbers = #tpu.dot_dimension_numbers<[1], [0], [0], [1], [0, 0, 1, 1], [], []>} : vector<8x32xbf16>, vector<32x64xbf16>, vector<8x64xf32> -> vector<8x64xf32>
    %64 = arith.addf %58, %63 : vector<8x64xf32>
    %65 = vector.extract_strided_slice %51 {offsets = [16, 0], sizes = [8, 32], strides = [1, 1]} : vector<24x32xf32> to vector<8x32xf32>
    %66 = arith.truncf %65 : vector<8x32xf32> to vector<8x32xbf16>
    %c2_40 = arith.constant 2 : index
    %c0_41 = arith.constant 0 : index
    %c0_42 = arith.constant 0 : index
    %67 = vector.load %arg13[%c2_40, %c0_41, %c0_42] : memref<3x32x64xbf16, #tpu.memory_space<vmem>>, vector<1x32x64xbf16>
    %68 = vector.shape_cast %67 : vector<1x32x64xbf16> to vector<32x64xbf16>
    %cst_43 = arith.constant dense<0.000000e+00> : vector<8x64xf32>
    %69 = tpu.matmul %66, %68, %cst_43 {dimension_numbers = #tpu.dot_dimension_numbers<[1], [0], [0], [1], [0, 0, 1, 1], [], []>} : vector<8x32xbf16>, vector<32x64xbf16>, vector<8x64xf32> -> vector<8x64xf32>
    %70 = arith.addf %64, %69 : vector<8x64xf32>
    %c0_44 = arith.constant 0 : index
    %c0_45 = arith.constant 0 : index
    %71 = vector.load %arg10[%c0_44, %c0_45] : memref<8x1xf32, #tpu.memory_space<vmem>>, vector<8x1xf32>
    %72 = vector.broadcast %71 : vector<8x1xf32> to vector<8x64xf32>
    %73 = arith.addf %70, %72 : vector<8x64xf32>
    %74 = vector.extract_strided_slice %73 {offsets = [0, 0], sizes = [4, 64], strides = [1, 1]} : vector<8x64xf32> to vector<4x64xf32>
    %75 = math.tanh %74 : vector<4x64xf32>
    %76 = vector.extract_strided_slice %73 {offsets = [4, 0], sizes = [4, 64], strides = [1, 1]} : vector<8x64xf32> to vector<4x64xf32>
    %77 = arith.negf %76 : vector<4x64xf32>
    %78 = math.exp %77 : vector<4x64xf32>
    %cst_46 = arith.constant 1.000000e+00 : f32
    %79 = vector.broadcast %cst_46 : f32 to vector<4x64xf32>
    %80 = arith.addf %79, %78 : vector<4x64xf32>
    %81 = arith.divf %79, %80 : vector<4x64xf32>
    %82 = arith.mulf %75, %81 : vector<4x64xf32>
    %c0_47 = arith.constant 0 : index
    %c0_48 = arith.constant 0 : index
    %83 = vector.load %arg11[%c0_47, %c0_48] : memref<4x4xbf16, #tpu.memory_space<vmem>>, vector<4x4xbf16>
    %84 = arith.truncf %82 : vector<4x64xf32> to vector<4x64xbf16>
    %cst_49 = arith.constant dense<0.000000e+00> : vector<4x64xf32>
    %85 = tpu.matmul %83, %84, %cst_49 {dimension_numbers = #tpu.dot_dimension_numbers<[1], [0], [0], [1], [0, 0, 1, 1], [], []>} : vector<4x4xbf16>, vector<4x64xbf16>, vector<4x64xf32> -> vector<4x64xf32>
    %c0_50 = arith.constant 0 : index
    %c0_51 = arith.constant 0 : index
    %86 = vector.load %arg12[%c0_50, %c0_51] : memref<4x1xf32, #tpu.memory_space<vmem>>, vector<4x1xf32>
    %87 = vector.broadcast %86 : vector<4x1xf32> to vector<4x64xf32>
    %88 = arith.addf %85, %87 : vector<4x64xf32>
    %c0_52 = arith.constant 0 : index
    %c0_53 = arith.constant 0 : index
    %89 = vector.load %arg14[%c0_52, %c0_53] : memref<4x64xf32, #tpu.memory_space<vmem>>, vector<4x64xf32>
    tpu.vector_store %arg14[%c0_52, %c0_53], %88 {strides = array<i32>} : memref<4x64xf32, #tpu.memory_space<vmem>>, vector<4x64xf32>,
    return
  }
  func.func @transform_0(%arg0: i32) -> (i32, i32) {
    %c0_i32 = arith.constant 0 : i32
    %c0_i32_0 = arith.constant 0 : i32
    return %c0_i32, %arg0 : i32, i32
  }
  func.func @transform_1(%arg0: i32) -> (i32, i32) {
    %c0_i32 = arith.constant 0 : i32
    %c0_i32_0 = arith.constant 0 : i32
    %c0_i32_1 = arith.constant 0 : i32
    return %c0_i32, %c0_i32_0 : i32, i32
  }
  func.func @transform_2(%arg0: i32) -> (i32, i32) {
    %c0_i32 = arith.constant 0 : i32
    %c0_i32_0 = arith.constant 0 : i32
    %c0_i32_1 = arith.constant 0 : i32
    return %c0_i32, %c0_i32_0 : i32, i32
  }
  func.func @transform_3(%arg0: i32) -> (i32, i32) {
    %c0_i32 = arith.constant 0 : i32
    %c0_i32_0 = arith.constant 0 : i32
    %c0_i32_1 = arith.constant 0 : i32
    return %c0_i32, %c0_i32_0 : i32, i32
  }
  func.func @transform_4(%arg0: i32) -> (i32, i32) {
    %c0_i32 = arith.constant 0 : i32
    %c0_i32_0 = arith.constant 0 : i32
    %c0_i32_1 = arith.constant 0 : i32
    return %c0_i32, %c0_i32_0 : i32, i32
  }
  func.func @transform_5(%arg0: i32) -> (i32, i32) {
    %c0_i32 = arith.constant 0 : i32
    %c0_i32_0 = arith.constant 0 : i32
    %c0_i32_1 = arith.constant 0 : i32
    return %c0_i32, %c0_i32_0 : i32, i32
  }
  func.func @transform_6(%arg0: i32) -> (i32, i32) {
    %c0_i32 = arith.constant 0 : i32
    %c0_i32_0 = arith.constant 0 : i32
    %c0_i32_1 = arith.constant 0 : i32
    return %c0_i32, %c0_i32_0 : i32, i32
  }
  func.func @transform_7(%arg0: i32) -> (i32, i32, i32) {
    %c0_i32 = arith.constant 0 : i32
    %c0_i32_0 = arith.constant 0 : i32
    %c0_i32_1 = arith.constant 0 : i32
    %c0_i32_2 = arith.constant 0 : i32
    return %c0_i32, %c0_i32_0, %c0_i32_1 : i32, i32, i32
  }
  func.func @transform_8(%arg0: i32) -> (i32, i32) {
    %c0_i32 = arith.constant 0 : i32
    %c0_i32_0 = arith.constant 0 : i32
    %c0_i32_1 = arith.constant 0 : i32
    return %c0_i32, %c0_i32_0 : i32, i32
  }
  func.func @transform_9(%arg0: i32) -> (i32, i32) {
    %c0_i32 = arith.constant 0 : i32
    %c0_i32_0 = arith.constant 0 : i32
    %c0_i32_1 = arith.constant 0 : i32
    return %c0_i32, %c0_i32_0 : i32, i32
  }
  func.func @transform_10(%arg0: i32) -> (i32, i32) {
    %c0_i32 = arith.constant 0 : i32
    %c0_i32_0 = arith.constant 0 : i32
    %c0_i32_1 = arith.constant 0 : i32
    return %c0_i32, %c0_i32_0 : i32, i32
  }
  func.func @transform_11(%arg0: i32) -> (i32, i32) {
    %c0_i32 = arith.constant 0 : i32
    %c0_i32_0 = arith.constant 0 : i32
    %c0_i32_1 = arith.constant 0 : i32
    return %c0_i32, %c0_i32_0 : i32, i32
  }
  func.func @transform_12(%arg0: i32) -> (i32, i32, i32) {
    %c0_i32 = arith.constant 0 : i32
    %c0_i32_0 = arith.constant 0 : i32
    %c0_i32_1 = arith.constant 0 : i32
    %c0_i32_2 = arith.constant 0 : i32
    return %c0_i32, %c0_i32_0, %c0_i32_1 : i32, i32, i32
  }
  func.func @transform_13(%arg0: i32) -> (i32, i32) {
    %c0_i32 = arith.constant 0 : i32
    %c0_i32_0 = arith.constant 0 : i32
    return %c0_i32, %arg0 : i32, i32
  }
}

</mosaic_0001>

<llo_original>
// kernel: decoder_forward.1
$region0: #{decoder_forward.1}
  #allocation0 [shape = 'u32[]', space=smem, size = 0x4, offset = 0x4, fixed_abs, tag = 'smem constant byte address 0x4 - core index']
  #allocation1 [shape = 'u32[144,128]{1,0:T(1,128)}', space=vmem, size = 0x12000, scoped, tag = 'internal scratch']
  %s0 = inlined_call_operand.vmem [shape: f32[8,16], index: 0, kind: input, shape index: {}]
  %s1 = inlined_call_operand.vmem [shape: bf16[16,8], index: 1, kind: input, shape index: {}]
  %s2 = inlined_call_operand.vmem [shape: f32[16,1], index: 2, kind: input, shape index: {}]
  %s3 = inlined_call_operand.vmem [shape: bf16[48,16], index: 3, kind: input, shape index: {}]
  %s4 = inlined_call_operand.vmem [shape: f32[16,1], index: 4, kind: input, shape index: {}]
  %s5 = inlined_call_operand.vmem [shape: bf16[8,8], index: 5, kind: input, shape index: {}]
  %s6 = inlined_call_operand.vmem [shape: f32[8,1], index: 6, kind: input, shape index: {}]
  %s7 = inlined_call_operand.vmem [shape: bf16[3,16,32], index: 7, kind: input, shape index: {}]
  %s8 = inlined_call_operand.vmem [shape: bf16[24,8], index: 8, kind: input, shape index: {}]
  %s9 = inlined_call_operand.vmem [shape: f32[8,1], index: 9, kind: input, shape index: {}]
  %s10 = inlined_call_operand.vmem [shape: bf16[4,4], index: 10, kind: input, shape index: {}]
  %s11 = inlined_call_operand.vmem [shape: f32[4,1], index: 11, kind: input, shape index: {}]
  %s12 = inlined_call_operand.vmem [shape: bf16[3,32,64], index: 12, kind: input, shape index: {}]
  %s13 = inlined_call_operand.vmem [shape: f32[4,64], index: 13, kind: output, shape index: {}]
  %s14 = sld [smem:[#allocation0]]
  $region62: #{decoder_forward.1} parent=0
    _
  %s16 = ssub.s32 1, %s14
  %s17 = scalar_select 0, %s16, %s14
  // Predicated region
  $region2: #{decoder_forward.1} parent=0 // pred_check
    _
  $region3: #{decoder_forward.1} parent=0 // pred_check_branch
    %19 = sbr.rel (0) target = $region5
  $region4: #{decoder_forward.1} parent=0 // pred_region
    _
  $region5: #{decoder_forward.1} parent=0 // pred_fallthru
    _
  // Predicated region
  $region6: #{decoder_forward.1} parent=0 // pred_check
    _
  $region7: #{decoder_forward.1} parent=0 // pred_check_branch
    %21 = sbr.rel (0) target = $region9
  $region8: #{decoder_forward.1} parent=0 // pred_region
    _
  $region9: #{decoder_forward.1} parent=0 // pred_fallthru
    _
  // Predicated region
  $region10: #{decoder_forward.1} parent=0 // pred_check
    _
  $region11: #{decoder_forward.1} parent=0 // pred_check_branch
    %23 = sbr.rel (0) target = $region13
  $region12: #{decoder_forward.1} parent=0 // pred_region
    _
  $region13: #{decoder_forward.1} parent=0 // pred_fallthru
    _
  // Predicated region
  $region14: #{decoder_forward.1} parent=0 // pred_check
    _
  $region15: #{decoder_forward.1} parent=0 // pred_check_branch
    %25 = sbr.rel (0) target = $region17
  $region16: #{decoder_forward.1} parent=0 // pred_region
    _
  $region17: #{decoder_forward.1} parent=0 // pred_fallthru
    _
  // Predicated region
  $region18: #{decoder_forward.1} parent=0 // pred_check
    _
  $region19: #{decoder_forward.1} parent=0 // pred_check_branch
    %27 = sbr.rel (0) target = $region21
  $region20: #{decoder_forward.1} parent=0 // pred_region
    _
  $region21: #{decoder_forward.1} parent=0 // pred_fallthru
    _
  // Predicated region
  $region22: #{decoder_forward.1} parent=0 // pred_check
    _
  $region23: #{decoder_forward.1} parent=0 // pred_check_branch
    %29 = sbr.rel (0) target = $region25
  $region24: #{decoder_forward.1} parent=0 // pred_region
    _
  $region25: #{decoder_forward.1} parent=0 // pred_fallthru
    _
  // Predicated region
  $region26: #{decoder_forward.1} parent=0 // pred_check
    _
  $region27: #{decoder_forward.1} parent=0 // pred_check_branch
    %31 = sbr.rel (0) target = $region29
  $region28: #{decoder_forward.1} parent=0 // pred_region
    _
  $region29: #{decoder_forward.1} parent=0 // pred_fallthru
    _
  // Predicated region
  $region30: #{decoder_forward.1} parent=0 // pred_check
    _
  $region31: #{decoder_forward.1} parent=0 // pred_check_branch
    %33 = sbr.rel (0) target = $region33
  $region32: #{decoder_forward.1} parent=0 // pred_region
    _
  $region33: #{decoder_forward.1} parent=0 // pred_fallthru
    _
  // Predicated region
  $region34: #{decoder_forward.1} parent=0 // pred_check
    _
  $region35: #{decoder_forward.1} parent=0 // pred_check_branch
    %35 = sbr.rel (0) target = $region37
  $region36: #{decoder_forward.1} parent=0 // pred_region
    _
  $region37: #{decoder_forward.1} parent=0 // pred_fallthru
    _
  // Predicated region
  $region38: #{decoder_forward.1} parent=0 // pred_check
    _
  $region39: #{decoder_forward.1} parent=0 // pred_check_branch
    %37 = sbr.rel (0) target = $region41
  $region40: #{decoder_forward.1} parent=0 // pred_region
    _
  $region41: #{decoder_forward.1} parent=0 // pred_fallthru
    _
  // Predicated region
  $region42: #{decoder_forward.1} parent=0 // pred_check
    _
  $region43: #{decoder_forward.1} parent=0 // pred_check_branch
    %39 = sbr.rel (0) target = $region45
  $region44: #{decoder_forward.1} parent=0 // pred_region
    _
  $region45: #{decoder_forward.1} parent=0 // pred_fallthru
    _
  // Predicated region
  $region46: #{decoder_forward.1} parent=0 // pred_check
    _
  $region47: #{decoder_forward.1} parent=0 // pred_check_branch
    %41 = sbr.rel (0) target = $region49
  $region48: #{decoder_forward.1} parent=0 // pred_region
    _
  $region49: #{decoder_forward.1} parent=0 // pred_fallthru
    _
  // Predicated region
  $region50: #{decoder_forward.1} parent=0 // pred_check
    _
  $region51: #{decoder_forward.1} parent=0 // pred_check_branch
    %43 = sbr.rel (0) target = $region53
  $region52: #{decoder_forward.1} parent=0 // pred_region
    _
  $region53: #{decoder_forward.1} parent=0 // pred_fallthru
    _
  %v45 = vld [vmem:[%s1] sm:$0xf]
  %v46 = vld [vmem:[%s1 + $0x4] sm:$0xf]
  %v47 = vld [vmem:[%s0] sm:$0xff]
  %v48 = vpack.c.bf16 %v47, %v47
  %v49 = vld [vmem:[%s2] sm:$0xff]
  %v50 = vld [vmem:[%s2 + $0x8] sm:$0xff]
  %52 = vset.pattern.permute.xlu0 0
  %53 = vperm.xlu0 %52, %v49
  %v54 = vpop.permute.xlu0 %53
  %57 = vset.pattern.permute.xlu0 0
  %58 = vperm.xlu0 %57, %v50
  %v59 = vpop.permute.xlu0 %58
  %v63 = vunpack.c.l.b16 %v45
  %v64 = vunpack.c.l.b16 %v46
  %v65 = vpack.c.b16 %v64, %v63
  %vm66 = vcmask 64512
  %v68 = vsel %vm66, %v65, 0
  %vm70 = vcmask 1043456
  %v72 = vsel %vm70, %v48, 0
  %74 = vmatprep.subr.bf16.mxu0 0
  %75 = vmatpush1.bf16.msra.mxu0 %v72
  %76 = vmatprep.subr.bf16.mxu0 0
  %77 = vmatpush1.bf16.msra.mxu0 0
  %78 = vmatprep.subr.bf16.mxu0 0
  %79 = vmatpush1.bf16.msra.mxu0 0
  %80 = vmatprep.subr.bf16.mxu0 0
  %81 = vmatpush1.bf16.msra.mxu0 0
  %82 = vmatprep.subr.bf16.mxu0 0
  %83 = vmatpush1.bf16.msra.mxu0 0
  %84 = vmatprep.subr.bf16.mxu0 0
  %85 = vmatpush1.bf16.msra.mxu0 0
  %86 = vmatprep.subr.bf16.mxu0 0
  %87 = vmatpush1.bf16.msra.mxu0 0
  %88 = vmatprep.subr.bf16.mxu0 0
  %89 = vmatpush1.bf16.msra.mxu0 0
  %90 = vmatprep.subr.bf16.mxu0 0
  %91 = vmatpush1.bf16.msra.mxu0 0
  %92 = vmatprep.subr.bf16.mxu0 0
  %93 = vmatpush1.bf16.msra.mxu0 0
  %94 = vmatprep.subr.bf16.mxu0 0
  %95 = vmatpush1.bf16.msra.mxu0 0
  %96 = vmatprep.subr.bf16.mxu0 0
  %97 = vmatpush1.bf16.msra.mxu0 0
  %98 = vmatprep.subr.bf16.mxu0 0
  %99 = vmatpush1.bf16.msra.mxu0 0
  %100 = vmatprep.subr.bf16.mxu0 0
  %101 = vmatpush1.bf16.msra.mxu0 0
  %102 = vmatprep.subr.bf16.mxu0 0
  %103 = vmatpush1.bf16.msra.mxu0 0
  %104 = vmatprep.subr.bf16.mxu0 0
  %105 = vmatpush1.bf16.msra.mxu0 0
  %106 = vmatprep.mubr.bf16.mxu0 0
  %107 = vmatmul.mubr.bf16.gmra.mrb[0].mxu0 %v68
  %v108 = vpop.f32.mrb[0].mxu0
  %v109 = vadd.f32 %v54, %v108
  %v110 = vpop.f32.mrb[0].mxu0
  %v111 = vpop.f32.mrb[0].mxu0
  %v112 = vadd.f32 %v59, %v111
  %v113 = vpop.f32.mrb[0].mxu0
  %114 = vdwg.mxu0
  %v115 = vmax.f32 %v109, 0.0
  %v116 = vmax.f32 %v112, 0.0
  %v117 = vpack.c.bf16 %v116, %v115
  %v118 = vld [vmem:[%s3] sm:$0xf]
  %v119 = vld [vmem:[%s3 + $0x4] sm:$0xf]
  %v120 = vld [vmem:[%s3 + $0x8] sm:$0xf]
  %v121 = vld [vmem:[%s3 + $0xc] sm:$0xf]
  %v122 = vld [vmem:[%s3 + $0x10] sm:$0xf]
  %v123 = vld [vmem:[%s3 + $0x14] sm:$0xf]
  %v130 = vunpack.c.l.b16 %v118
  %v131 = vunpack.c.l.b16 %v119
  %v132 = vunpack.c.l.b16 %v120
  %v133 = vunpack.c.l.b16 %v121
  %v134 = vunpack.c.l.b16 %v122
  %v135 = vunpack.c.l.b16 %v123
  %v136 = vpack.c.b16 %v131, %v130
  %v137 = vpack.c.b16 %v133, %v132
  %v138 = vpack.c.b16 %v135, %v134
  %vm139 = vcmask 130048
  %v141 = vsel %vm139, %v136, 0
  %v144 = vsel %vm139, %v137, 0
  %v147 = vsel %vm139, %v138, 0
  %149 = vmatprep.subr.bf16.mxu0 0
  %150 = vmatpush1.bf16.msra.mxu0 %v117
  %151 = vmatprep.subr.bf16.mxu0 0
  %152 = vmatpush1.bf16.msra.mxu0 0
  %153 = vmatprep.subr.bf16.mxu0 0
  %154 = vmatpush1.bf16.msra.mxu0 0
  %155 = vmatprep.subr.bf16.mxu0 0
  %156 = vmatpush1.bf16.msra.mxu0 0
  %157 = vmatprep.subr.bf16.mxu0 0
  %158 = vmatpush1.bf16.msra.mxu0 0
  %159 = vmatprep.subr.bf16.mxu0 0
  %160 = vmatpush1.bf16.msra.mxu0 0
  %161 = vmatprep.subr.bf16.mxu0 0
  %162 = vmatpush1.bf16.msra.mxu0 0
  %163 = vmatprep.subr.bf16.mxu0 0
  %164 = vmatpush1.bf16.msra.mxu0 0
  %165 = vmatprep.subr.bf16.mxu0 0
  %166 = vmatpush1.bf16.msra.mxu0 0
  %167 = vmatprep.subr.bf16.mxu0 0
  %168 = vmatpush1.bf16.msra.mxu0 0
  %169 = vmatprep.subr.bf16.mxu0 0
  %170 = vmatpush1.bf16.msra.mxu0 0
  %171 = vmatprep.subr.bf16.mxu0 0
  %172 = vmatpush1.bf16.msra.mxu0 0
  %173 = vmatprep.subr.bf16.mxu0 0
  %174 = vmatpush1.bf16.msra.mxu0 0
  %175 = vmatprep.subr.bf16.mxu0 0
  %176 = vmatpush1.bf16.msra.mxu0 0
  %177 = vmatprep.subr.bf16.mxu0 0
  %178 = vmatpush1.bf16.msra.mxu0 0
  %179 = vmatprep.subr.bf16.mxu0 0
  %180 = vmatpush1.bf16.msra.mxu0 0
  %181 = vmatprep.mubr.bf16.mxu0 0
  %182 = vmatmul.mubr.bf16.gmra.mrb[0].mxu0 %v141
  %v183 = vpop.f32.mrb[0].mxu0
  %v184 = vadd.f32 0.0, %v183
  %v185 = vpop.f32.mrb[0].mxu0
  %v186 = vpop.f32.mrb[0].mxu0
  %v187 = vadd.f32 0.0, %v186
  %v188 = vpop.f32.mrb[0].mxu0
  %189 = vmatprep.mubr.bf16.mxu0 0
  %190 = vmatmul.mubr.bf16.gmra.mrb[0].mxu0 %v144
  %v191 = vpop.f32.mrb[0].mxu0
  %v192 = vadd.f32 0.0, %v191
  %v193 = vpop.f32.mrb[0].mxu0
  %v194 = vpop.f32.mrb[0].mxu0
  %v195 = vadd.f32 0.0, %v194
  %v196 = vpop.f32.mrb[0].mxu0
  %197 = vmatprep.mubr.bf16.mxu0 0
  %198 = vmatmul.mubr.bf16.gmra.mrb[0].mxu0 %v147
  %v199 = vpop.f32.mrb[0].mxu0
  %v200 = vadd.f32 0.0, %v199
  %v201 = vpop.f32.mrb[0].mxu0
  %v202 = vpop.f32.mrb[0].mxu0
  %v203 = vadd.f32 0.0, %v202
  %v204 = vpop.f32.mrb[0].mxu0
  %205 = vdwg.mxu0
  %v206 = vpack.c.bf16 %v187, %v184
  %v207 = vld [vmem:[%s7] sm:$0xf]
  %v208 = vld [vmem:[%s7 + $0x4] sm:$0xf]
  %v209 = vpack.c.bf16 %v195, %v192
  %s210 = scalar_lea.vmem %s7, 8
  %v211 = vld [vmem:[%s210] sm:$0xf]
  %v212 = vld [vmem:[%s210 + $0x4] sm:$0xf]
  %v215 = vunpack.c.l.b16 %v211
  %v216 = vunpack.c.l.b16 %v212
  %v217 = vpack.c.b16 %v216, %v215
  %v220 = vsel %vm139, %v209, 0
  %222 = vmatprep.subr.bf16.mxu0 0
  %223 = vmatpush1.bf16.msra.mxu0 %v217
  %224 = vmatprep.subr.bf16.mxu0 0
  %225 = vmatpush1.bf16.msra.mxu0 0
  %226 = vmatprep.subr.bf16.mxu0 0
  %227 = vmatpush1.bf16.msra.mxu0 0
  %228 = vmatprep.subr.bf16.mxu0 0
  %229 = vmatpush1.bf16.msra.mxu0 0
  %230 = vmatprep.subr.bf16.mxu0 0
  %231 = vmatpush1.bf16.msra.mxu0 0
  %232 = vmatprep.subr.bf16.mxu0 0
  %233 = vmatpush1.bf16.msra.mxu0 0
  %234 = vmatprep.subr.bf16.mxu0 0
  %235 = vmatpush1.bf16.msra.mxu0 0
  %236 = vmatprep.subr.bf16.mxu0 0
  %237 = vmatpush1.bf16.msra.mxu0 0
  %238 = vmatprep.subr.bf16.mxu0 0
  %239 = vmatpush1.bf16.msra.mxu0 0
  %240 = vmatprep.subr.bf16.mxu0 0
  %241 = vmatpush1.bf16.msra.mxu0 0
  %242 = vmatprep.subr.bf16.mxu0 0
  %243 = vmatpush1.bf16.msra.mxu0 0
  %244 = vmatprep.subr.bf16.mxu0 0
  %245 = vmatpush1.bf16.msra.mxu0 0
  %246 = vmatprep.subr.bf16.mxu0 0
  %247 = vmatpush1.bf16.msra.mxu0 0
  %248 = vmatprep.subr.bf16.mxu0 0
  %249 = vmatpush1.bf16.msra.mxu0 0
  %250 = vmatprep.subr.bf16.mxu0 0
  %251 = vmatpush1.bf16.msra.mxu0 0
  %252 = vmatprep.subr.bf16.mxu0 0
  %253 = vmatpush1.bf16.msra.mxu0 0
  %254 = vmatprep.mubr.bf16.mxu0 0
  %255 = vmatmul.mubr.bf16.gmra.mrb[0].mxu0 %v220
  %v256 = vpop.f32.mrb[0].mxu0
  %v257 = vadd.f32 0.0, %v256
  %v258 = vpop.f32.mrb[0].mxu0
  %v259 = vpop.f32.mrb[0].mxu0
  %v260 = vadd.f32 0.0, %v259
  %v261 = vpop.f32.mrb[0].mxu0
  %262 = vdwg.mxu0
  %v265 = vunpack.c.l.b16 %v207
  %v266 = vunpack.c.l.b16 %v208
  %v267 = vpack.c.b16 %v266, %v265
  %v270 = vsel %vm139, %v206, 0
  %272 = vmatprep.subr.bf16.mxu0 0
  %273 = vmatpush1.bf16.msra.mxu0 %v267
  %274 = vmatprep.subr.bf16.mxu0 0
  %275 = vmatpush1.bf16.msra.mxu0 0
  %276 = vmatprep.subr.bf16.mxu0 0
  %277 = vmatpush1.bf16.msra.mxu0 0
  %278 = vmatprep.subr.bf16.mxu0 0
  %279 = vmatpush1.bf16.msra.mxu0 0
  %280 = vmatprep.subr.bf16.mxu0 0
  %281 = vmatpush1.bf16.msra.mxu0 0
  %282 = vmatprep.subr.bf16.mxu0 0
  %283 = vmatpush1.bf16.msra.mxu0 0
  %284 = vmatprep.subr.bf16.mxu0 0
  %285 = vmatpush1.bf16.msra.mxu0 0
  %286 = vmatprep.subr.bf16.mxu0 0
  %287 = vmatpush1.bf16.msra.mxu0 0
  %288 = vmatprep.subr.bf16.mxu0 0
  %289 = vmatpush1.bf16.msra.mxu0 0
  %290 = vmatprep.subr.bf16.mxu0 0
  %291 = vmatpush1.bf16.msra.mxu0 0
  %292 = vmatprep.subr.bf16.mxu0 0
  %293 = vmatpush1.bf16.msra.mxu0 0
  %294 = vmatprep.subr.bf16.mxu0 0
  %295 = vmatpush1.bf16.msra.mxu0 0
  %296 = vmatprep.subr.bf16.mxu0 0
  %297 = vmatpush1.bf16.msra.mxu0 0
  %298 = vmatprep.subr.bf16.mxu0 0
  %299 = vmatpush1.bf16.msra.mxu0 0
  %300 = vmatprep.subr.bf16.mxu0 0
  %301 = vmatpush1.bf16.msra.mxu0 0
  %302 = vmatprep.subr.bf16.mxu0 0
  %303 = vmatpush1.bf16.msra.mxu0 0
  %304 = vmatprep.mubr.bf16.mxu0 0
  %305 = vmatmul.mubr.bf16.gmra.mrb[0].mxu0 %v270
  %v306 = vpop.f32.mrb[0].mxu0
  %v307 = vadd.f32 %v257, %v306
  %v308 = vpop.f32.mrb[0].mxu0
  %v309 = vpop.f32.mrb[0].mxu0
  %v310 = vadd.f32 %v260, %v309
  %v311 = vpop.f32.mrb[0].mxu0
  %312 = vdwg.mxu0
  %v313 = vpack.c.bf16 %v203, %v200
  %s314 = scalar_lea.vmem %s7, 16
  %v315 = vld [vmem:[%s314] sm:$0xf]
  %v316 = vld [vmem:[%s314 + $0x4] sm:$0xf]
  %v319 = vunpack.c.l.b16 %v315
  %v320 = vunpack.c.l.b16 %v316
  %v321 = vpack.c.b16 %v320, %v319
  %v324 = vsel %vm139, %v313, 0
  %326 = vmatprep.subr.bf16.mxu0 0
  %327 = vmatpush1.bf16.msra.mxu0 %v321
  %328 = vmatprep.subr.bf16.mxu0 0
  %329 = vmatpush1.bf16.msra.mxu0 0
  %330 = vmatprep.subr.bf16.mxu0 0
  %331 = vmatpush1.bf16.msra.mxu0 0
  %332 = vmatprep.subr.bf16.mxu0 0
  %333 = vmatpush1.bf16.msra.mxu0 0
  %334 = vmatprep.subr.bf16.mxu0 0
  %335 = vmatpush1.bf16.msra.mxu0 0
  %336 = vmatprep.subr.bf16.mxu0 0
  %337 = vmatpush1.bf16.msra.mxu0 0
  %338 = vmatprep.subr.bf16.mxu0 0
  %339 = vmatpush1.bf16.msra.mxu0 0
  %340 = vmatprep.subr.bf16.mxu0 0
  %341 = vmatpush1.bf16.msra.mxu0 0
  %342 = vmatprep.subr.bf16.mxu0 0
  %343 = vmatpush1.bf16.msra.mxu0 0
  %344 = vmatprep.subr.bf16.mxu0 0
  %345 = vmatpush1.bf16.msra.mxu0 0
  %346 = vmatprep.subr.bf16.mxu0 0
  %347 = vmatpush1.bf16.msra.mxu0 0
  %348 = vmatprep.subr.bf16.mxu0 0
  %349 = vmatpush1.bf16.msra.mxu0 0
  %350 = vmatprep.subr.bf16.mxu0 0
  %351 = vmatpush1.bf16.msra.mxu0 0
  %352 = vmatprep.subr.bf16.mxu0 0
  %353 = vmatpush1.bf16.msra.mxu0 0
  %354 = vmatprep.subr.bf16.mxu0 0
  %355 = vmatpush1.bf16.msra.mxu0 0
  %356 = vmatprep.subr.bf16.mxu0 0
  %357 = vmatpush1.bf16.msra.mxu0 0
  %358 = vmatprep.mubr.bf16.mxu0 0
  %359 = vmatmul.mubr.bf16.gmra.mrb[0].mxu0 %v324
  %v360 = vpop.f32.mrb[0].mxu0
  %v361 = vadd.f32 0.0, %v360
  %v362 = vpop.f32.mrb[0].mxu0
  %v363 = vpop.f32.mrb[0].mxu0
  %v364 = vadd.f32 0.0, %v363
  %v365 = vpop.f32.mrb[0].mxu0
  %366 = vdwg.mxu0
  %v367 = vadd.f32 %v307, %v361
  %v368 = vadd.f32 %v310, %v364
  %v369 = vld [vmem:[%s4] sm:$0xff]
  %v370 = vld [vmem:[%s4 + $0x8] sm:$0xff]
  %372 = vset.pattern.permute.xlu0 0
  %373 = vperm.xlu0 %372, %v369
  %v374 = vpop.permute.xlu0 %373
  %377 = vset.pattern.permute.xlu0 0
  %378 = vperm.xlu0 %377, %v370
  %v379 = vpop.permute.xlu0 %378
  %v381 = vadd.f32 %v367, %v374
  %v382 = vadd.f32 %v368, %v379
  %v383 = vtanh.pop %v381
  %v384 = vxor.u32 %v382, 2147483648
  %v385 = vmul.f32 %v384, 1.442695
  %v386 = vpow.pop %v385
  %v387 = vadd.f32 %v386, 1.0
  %v388 = vrcp.pop %v387
  %v389 = vmul.f32 1.0, %v388
  %v390 = vmul.f32 %v383, %v389
  %v391 = vld [vmem:[%s5] sm:$0xf]
  %v392 = vpack.c.bf16 %v390, %v390
  %v393 = vld [vmem:[%s6] sm:$0xff]
  %395 = vset.pattern.permute.xlu0 0
  %396 = vperm.xlu0 %395, %v393
  %v397 = vpop.permute.xlu0 %396
  %v400 = vsel %vm66, %v391, 0
  %v403 = vsel %vm70, %v392, 0
  %405 = vmatprep.subr.bf16.mxu0 0
  %406 = vmatpush1.bf16.msra.mxu0 %v403
  %407 = vmatprep.subr.bf16.mxu0 0
  %408 = vmatpush1.bf16.msra.mxu0 0
  %409 = vmatprep.subr.bf16.mxu0 0
  %410 = vmatpush1.bf16.msra.mxu0 0
  %411 = vmatprep.subr.bf16.mxu0 0
  %412 = vmatpush1.bf16.msra.mxu0 0
  %413 = vmatprep.subr.bf16.mxu0 0
  %414 = vmatpush1.bf16.msra.mxu0 0
  %415 = vmatprep.subr.bf16.mxu0 0
  %416 = vmatpush1.bf16.msra.mxu0 0
  %417 = vmatprep.subr.bf16.mxu0 0
  %418 = vmatpush1.bf16.msra.mxu0 0
  %419 = vmatprep.subr.bf16.mxu0 0
  %420 = vmatpush1.bf16.msra.mxu0 0
  %421 = vmatprep.subr.bf16.mxu0 0
  %422 = vmatpush1.bf16.msra.mxu0 0
  %423 = vmatprep.subr.bf16.mxu0 0
  %424 = vmatpush1.bf16.msra.mxu0 0
  %425 = vmatprep.subr.bf16.mxu0 0
  %426 = vmatpush1.bf16.msra.mxu0 0
  %427 = vmatprep.subr.bf16.mxu0 0
  %428 = vmatpush1.bf16.msra.mxu0 0
  %429 = vmatprep.subr.bf16.mxu0 0
  %430 = vmatpush1.bf16.msra.mxu0 0
  %431 = vmatprep.subr.bf16.mxu0 0
  %432 = vmatpush1.bf16.msra.mxu0 0
  %433 = vmatprep.subr.bf16.mxu0 0
  %434 = vmatpush1.bf16.msra.mxu0 0
  %435 = vmatprep.subr.bf16.mxu0 0
  %436 = vmatpush1.bf16.msra.mxu0 0
  %437 = vmatprep.mubr.bf16.mxu0 0
  %438 = vmatmul.mubr.bf16.gmra.mrb[0].mxu0 %v400
  %v439 = vpop.f32.mrb[0].mxu0
  %v440 = vadd.f32 %v397, %v439
  %v441 = vpop.f32.mrb[0].mxu0
  %v442 = vpop.f32.mrb[0].mxu0
  %v443 = vpop.f32.mrb[0].mxu0
  %444 = vdwg.mxu0
  %v445 = vpack.c.bf16 %v440, %v440
  %v446 = vld [vmem:[%s8] sm:$0xf]
  %v447 = vld [vmem:[%s8 + $0x4] sm:$0xf]
  %v448 = vld [vmem:[%s8 + $0x8] sm:$0xf]
  %v452 = vunpack.c.l.b16 %v446
  %v453 = vunpack.c.l.b16 %v447
  %v454 = vunpack.c.l.b16 %v448
  %v455 = vpack.c.b16 %v453, %v452
  %v456 = vpack.c.b16 %v454, %v454
  %v458 = vsel %vm66, %v455, 0
  %v461 = vsel %vm66, %v456, 0
  %v464 = vsel %vm70, %v445, 0
  %466 = vmatprep.subr.bf16.mxu0 0
  %467 = vmatpush1.bf16.msra.mxu0 %v464
  %468 = vmatprep.subr.bf16.mxu0 0
  %469 = vmatpush1.bf16.msra.mxu0 0
  %470 = vmatprep.subr.bf16.mxu0 0
  %471 = vmatpush1.bf16.msra.mxu0 0
  %472 = vmatprep.subr.bf16.mxu0 0
  %473 = vmatpush1.bf16.msra.mxu0 0
  %474 = vmatprep.subr.bf16.mxu0 0
  %475 = vmatpush1.bf16.msra.mxu0 0
  %476 = vmatprep.subr.bf16.mxu0 0
  %477 = vmatpush1.bf16.msra.mxu0 0
  %478 = vmatprep.subr.bf16.mxu0 0
  %479 = vmatpush1.bf16.msra.mxu0 0
  %480 = vmatprep.subr.bf16.mxu0 0
  %481 = vmatpush1.bf16.msra.mxu0 0
  %482 = vmatprep.subr.bf16.mxu0 0
  %483 = vmatpush1.bf16.msra.mxu0 0
  %484 = vmatprep.subr.bf16.mxu0 0
  %485 = vmatpush1.bf16.msra.mxu0 0
  %486 = vmatprep.subr.bf16.mxu0 0
  %487 = vmatpush1.bf16.msra.mxu0 0
  %488 = vmatprep.subr.bf16.mxu0 0
  %489 = vmatpush1.bf16.msra.mxu0 0
  %490 = vmatprep.subr.bf16.mxu0 0
  %491 = vmatpush1.bf16.msra.mxu0 0
  %492 = vmatprep.subr.bf16.mxu0 0
  %493 = vmatpush1.bf16.msra.mxu0 0
  %494 = vmatprep.subr.bf16.mxu0 0
  %495 = vmatpush1.bf16.msra.mxu0 0
  %496 = vmatprep.subr.bf16.mxu0 0
  %497 = vmatpush1.bf16.msra.mxu0 0
  %498 = vmatprep.mubr.bf16.mxu0 0
  %499 = vmatmul.mubr.bf16.gmra.mrb[0].mxu0 %v458
  %v500 = vpop.f32.mrb[0].mxu0
  %v501 = vadd.f32 0.0, %v500
  %v502 = vpop.f32.mrb[0].mxu0
  %v503 = vpop.f32.mrb[0].mxu0
  %v504 = vadd.f32 0.0, %v503
  %v505 = vpop.f32.mrb[0].mxu0
  %506 = vmatprep.mubr.bf16.mxu0 0
  %507 = vmatmul.mubr.bf16.gmra.mrb[0].mxu0 %v461
  %v508 = vpop.f32.mrb[0].mxu0
  %v509 = vadd.f32 0.0, %v508
  %v510 = vpop.f32.mrb[0].mxu0
  %v511 = vpop.f32.mrb[0].mxu0
  %v512 = vpop.f32.mrb[0].mxu0
  %513 = vdwg.mxu0
  %v514 = vpack.c.bf16 %v501, %v501
  %v515 = vld [vmem:[%s12] sm:$0xf]
  %v516 = vld [vmem:[%s12 + $0x4] sm:$0xf]
  %v517 = vld [vmem:[%s12 + $0x8] sm:$0xf]
  %v518 = vld [vmem:[%s12 + $0xc] sm:$0xf]
  %v519 = vpack.c.bf16 %v504, %v504
  %s520 = scalar_lea.vmem %s12, 16
  %v521 = vld [vmem:[%s520] sm:$0xf]
  %v522 = vld [vmem:[%s520 + $0x4] sm:$0xf]
  %v523 = vld [vmem:[%s520 + $0x8] sm:$0xf]
  %v524 = vld [vmem:[%s520 + $0xc] sm:$0xf]
  %v529 = vunpack.c.l.b16 %v521
  %v530 = vunpack.c.l.b16 %v522
  %v531 = vunpack.c.l.b16 %v523
  %v532 = vunpack.c.l.b16 %v524
  %v533 = vpack.c.b16 %v530, %v529
  %v534 = vpack.c.b16 %v532, %v531
  %vm537 = vcmask 261120
  %v539 = vsel %vm537, %v519, 0
  %541 = vmatprep.subr.bf16.mxu0 0
  %542 = vmatpush1.bf16.msra.mxu0 %v533
  %543 = vmatprep.subr.bf16.mxu0 0
  %544 = vmatpush1.bf16.msra.mxu0 %v534
  %545 = vmatprep.subr.bf16.mxu0 0
  %546 = vmatpush1.bf16.msra.mxu0 0
  %547 = vmatprep.subr.bf16.mxu0 0
  %548 = vmatpush1.bf16.msra.mxu0 0
  %549 = vmatprep.subr.bf16.mxu0 0
  %550 = vmatpush1.bf16.msra.mxu0 0
  %551 = vmatprep.subr.bf16.mxu0 0
  %552 = vmatpush1.bf16.msra.mxu0 0
  %553 = vmatprep.subr.bf16.mxu0 0
  %554 = vmatpush1.bf16.msra.mxu0 0
  %555 = vmatprep.subr.bf16.mxu0 0
  %556 = vmatpush1.bf16.msra.mxu0 0
  %557 = vmatprep.subr.bf16.mxu0 0
  %558 = vmatpush1.bf16.msra.mxu0 0
  %559 = vmatprep.subr.bf16.mxu0 0
  %560 = vmatpush1.bf16.msra.mxu0 0
  %561 = vmatprep.subr.bf16.mxu0 0
  %562 = vmatpush1.bf16.msra.mxu0 0
  %563 = vmatprep.subr.bf16.mxu0 0
  %564 = vmatpush1.bf16.msra.mxu0 0
  %565 = vmatprep.subr.bf16.mxu0 0
  %566 = vmatpush1.bf16.msra.mxu0 0
  %567 = vmatprep.subr.bf16.mxu0 0
  %568 = vmatpush1.bf16.msra.mxu0 0
  %569 = vmatprep.subr.bf16.mxu0 0
  %570 = vmatpush1.bf16.msra.mxu0 0
  %571 = vmatprep.subr.bf16.mxu0 0
  %572 = vmatpush1.bf16.msra.mxu0 0
  %573 = vmatprep.mubr.bf16.mxu0 0
  %574 = vmatmul.mubr.bf16.gmra.mrb[0].mxu0 %v539
  %v575 = vpop.f32.mrb[0].mxu0
  %v576 = vadd.f32 0.0, %v575
  %v577 = vpop.f32.mrb[0].mxu0
  %v578 = vpop.f32.mrb[0].mxu0
  %v579 = vpop.f32.mrb[0].mxu0
  %580 = vdwg.mxu0
  %v585 = vunpack.c.l.b16 %v515
  %v586 = vunpack.c.l.b16 %v516
  %v587 = vunpack.c.l.b16 %v517
  %v588 = vunpack.c.l.b16 %v518
  %v589 = vpack.c.b16 %v586, %v585
  %v590 = vpack.c.b16 %v588, %v587
  %v594 = vsel %vm537, %v514, 0
  %596 = vmatprep.subr.bf16.mxu0 0
  %597 = vmatpush1.bf16.msra.mxu0 %v589
  %598 = vmatprep.subr.bf16.mxu0 0
  %599 = vmatpush1.bf16.msra.mxu0 %v590
  %600 = vmatprep.subr.bf16.mxu0 0
  %601 = vmatpush1.bf16.msra.mxu0 0
  %602 = vmatprep.subr.bf16.mxu0 0
  %603 = vmatpush1.bf16.msra.mxu0 0
  %604 = vmatprep.subr.bf16.mxu0 0
  %605 = vmatpush1.bf16.msra.mxu0 0
  %606 = vmatprep.subr.bf16.mxu0 0
  %607 = vmatpush1.bf16.msra.mxu0 0
  %608 = vmatprep.subr.bf16.mxu0 0
  %609 = vmatpush1.bf16.msra.mxu0 0
  %610 = vmatprep.subr.bf16.mxu0 0
  %611 = vmatpush1.bf16.msra.mxu0 0
  %612 = vmatprep.subr.bf16.mxu0 0
  %613 = vmatpush1.bf16.msra.mxu0 0
  %614 = vmatprep.subr.bf16.mxu0 0
  %615 = vmatpush1.bf16.msra.mxu0 0
  %616 = vmatprep.subr.bf16.mxu0 0
  %617 = vmatpush1.bf16.msra.mxu0 0
  %618 = vmatprep.subr.bf16.mxu0 0
  %619 = vmatpush1.bf16.msra.mxu0 0
  %620 = vmatprep.subr.bf16.mxu0 0
  %621 = vmatpush1.bf16.msra.mxu0 0
  %622 = vmatprep.subr.bf16.mxu0 0
  %623 = vmatpush1.bf16.msra.mxu0 0
  %624 = vmatprep.subr.bf16.mxu0 0
  %625 = vmatpush1.bf16.msra.mxu0 0
  %626 = vmatprep.subr.bf16.mxu0 0
  %627 = vmatpush1.bf16.msra.mxu0 0
  %628 = vmatprep.mubr.bf16.mxu0 0
  %629 = vmatmul.mubr.bf16.gmra.mrb[0].mxu0 %v594
  %v630 = vpop.f32.mrb[0].mxu0
  %v631 = vadd.f32 %v576, %v630
  %v632 = vpop.f32.mrb[0].mxu0
  %v633 = vpop.f32.mrb[0].mxu0
  %v634 = vpop.f32.mrb[0].mxu0
  %635 = vdwg.mxu0
  %v636 = vpack.c.bf16 %v509, %v509
  %s637 = scalar_lea.vmem %s12, 32
  %v638 = vld [vmem:[%s637] sm:$0xf]
  %v639 = vld [vmem:[%s637 + $0x4] sm:$0xf]
  %v640 = vld [vmem:[%s637 + $0x8] sm:$0xf]
  %v641 = vld [vmem:[%s637 + $0xc] sm:$0xf]
  %v646 = vunpack.c.l.b16 %v638
  %v647 = vunpack.c.l.b16 %v639
  %v648 = vunpack.c.l.b16 %v640
  %v649 = vunpack.c.l.b16 %v641
  %v650 = vpack.c.b16 %v647, %v646
  %v651 = vpack.c.b16 %v649, %v648
  %v655 = vsel %vm537, %v636, 0
  %657 = vmatprep.subr.bf16.mxu0 0
  %658 = vmatpush1.bf16.msra.mxu0 %v650
  %659 = vmatprep.subr.bf16.mxu0 0
  %660 = vmatpush1.bf16.msra.mxu0 %v651
  %661 = vmatprep.subr.bf16.mxu0 0
  %662 = vmatpush1.bf16.msra.mxu0 0
  %663 = vmatprep.subr.bf16.mxu0 0
  %664 = vmatpush1.bf16.msra.mxu0 0
  %665 = vmatprep.subr.bf16.mxu0 0
  %666 = vmatpush1.bf16.msra.mxu0 0
  %667 = vmatprep.subr.bf16.mxu0 0
  %668 = vmatpush1.bf16.msra.mxu0 0
  %669 = vmatprep.subr.bf16.mxu0 0
  %670 = vmatpush1.bf16.msra.mxu0 0
  %671 = vmatprep.subr.bf16.mxu0 0
  %672 = vmatpush1.bf16.msra.mxu0 0
  %673 = vmatprep.subr.bf16.mxu0 0
  %674 = vmatpush1.bf16.msra.mxu0 0
  %675 = vmatprep.subr.bf16.mxu0 0
  %676 = vmatpush1.bf16.msra.mxu0 0
  %677 = vmatprep.subr.bf16.mxu0 0
  %678 = vmatpush1.bf16.msra.mxu0 0
  %679 = vmatprep.subr.bf16.mxu0 0
  %680 = vmatpush1.bf16.msra.mxu0 0
  %681 = vmatprep.subr.bf16.mxu0 0
  %682 = vmatpush1.bf16.msra.mxu0 0
  %683 = vmatprep.subr.bf16.mxu0 0
  %684 = vmatpush1.bf16.msra.mxu0 0
  %685 = vmatprep.subr.bf16.mxu0 0
  %686 = vmatpush1.bf16.msra.mxu0 0
  %687 = vmatprep.subr.bf16.mxu0 0
  %688 = vmatpush1.bf16.msra.mxu0 0
  %689 = vmatprep.mubr.bf16.mxu0 0
  %690 = vmatmul.mubr.bf16.gmra.mrb[0].mxu0 %v655
  %v691 = vpop.f32.mrb[0].mxu0
  %v692 = vadd.f32 0.0, %v691
  %v693 = vpop.f32.mrb[0].mxu0
  %v694 = vpop.f32.mrb[0].mxu0
  %v695 = vpop.f32.mrb[0].mxu0
  %696 = vdwg.mxu0
  %v697 = vadd.f32 %v631, %v692
  %v698 = vld [vmem:[%s9] sm:$0xff]
  %700 = vset.pattern.permute.xlu0 0
  %701 = vperm.xlu0 %700, %v698
  %v702 = vpop.permute.xlu0 %701
  %v704 = vadd.f32 %v697, %v702
  %v705 = vtanh.pop %v704
  %v706 = vxor.u32 %v704, 2147483648
  %v707 = vmul.f32 %v706, 1.442695
  %v708 = vpow.pop %v707
  %v709 = vadd.f32 %v708, 1.0
  %v710 = vrcp.pop %v709
  %v711 = vmul.f32 1.0, %v710
  %v713 = vrot.slane %v711, 4
  %v715 = vmul.f32 %v705, %v713
  %v716 = vld [vmem:[%s10] sm:$0x3]
  %v717 = vpack.c.bf16 %v715, %v715
  %v718 = vld [vmem:[%s11] sm:$0xf]
  %720 = vset.pattern.permute.xlu0 0
  %721 = vperm.xlu0 %720, %v718
  %v722 = vpop.permute.xlu0 %721
  %vm724 = vcmask 31744
  %v726 = vsel %vm724, %v716, 0
  %vm728 = vcmask 1041408
  %v730 = vsel %vm728, %v717, 0
  %732 = vmatprep.subr.bf16.mxu0 0
  %733 = vmatpush1.bf16.msra.mxu0 %v730
  %734 = vmatprep.subr.bf16.mxu0 0
  %735 = vmatpush1.bf16.msra.mxu0 0
  %736 = vmatprep.subr.bf16.mxu0 0
  %737 = vmatpush1.bf16.msra.mxu0 0
  %738 = vmatprep.subr.bf16.mxu0 0
  %739 = vmatpush1.bf16.msra.mxu0 0
  %740 = vmatprep.subr.bf16.mxu0 0
  %741 = vmatpush1.bf16.msra.mxu0 0
  %742 = vmatprep.subr.bf16.mxu0 0
  %743 = vmatpush1.bf16.msra.mxu0 0
  %744 = vmatprep.subr.bf16.mxu0 0
  %745 = vmatpush1.bf16.msra.mxu0 0
  %746 = vmatprep.subr.bf16.mxu0 0
  %747 = vmatpush1.bf16.msra.mxu0 0
  %748 = vmatprep.subr.bf16.mxu0 0
  %749 = vmatpush1.bf16.msra.mxu0 0
  %750 = vmatprep.subr.bf16.mxu0 0
  %751 = vmatpush1.bf16.msra.mxu0 0
  %752 = vmatprep.subr.bf16.mxu0 0
  %753 = vmatpush1.bf16.msra.mxu0 0
  %754 = vmatprep.subr.bf16.mxu0 0
  %755 = vmatpush1.bf16.msra.mxu0 0
  %756 = vmatprep.subr.bf16.mxu0 0
  %757 = vmatpush1.bf16.msra.mxu0 0
  %758 = vmatprep.subr.bf16.mxu0 0
  %759 = vmatpush1.bf16.msra.mxu0 0
  %760 = vmatprep.subr.bf16.mxu0 0
  %761 = vmatpush1.bf16.msra.mxu0 0
  %762 = vmatprep.subr.bf16.mxu0 0
  %763 = vmatpush1.bf16.msra.mxu0 0
  %764 = vmatprep.mubr.bf16.mxu0 0
  %765 = vmatmul.mubr.bf16.gmra.mrb[0].mxu0 %v726
  %v766 = vpop.f32.mrb[0].mxu0
  %v767 = vadd.f32 %v722, %v766
  %v768 = vpop.f32.mrb[0].mxu0
  %v769 = vpop.f32.mrb[0].mxu0
  %v770 = vpop.f32.mrb[0].mxu0
  %771 = vdwg.mxu0
  %vm772 = vcmask 519168
  %773 = vst.msk [vmem:[%s13] sm:$0xf] %vm772, %v767
  // Predicated region
  $region54: #{decoder_forward.1} parent=0 // pred_check
    _
  $region55: #{decoder_forward.1} parent=0 // pred_check_branch
    %775 = sbr.rel (0) target = $region57
  $region56: #{decoder_forward.1} parent=0 // pred_region
    _
  $region57: #{decoder_forward.1} parent=0 // pred_fallthru
    _
  // Predicated region
  $region58: #{decoder_forward.1} parent=0 // pred_check
    _
  $region59: #{decoder_forward.1} parent=0 // pred_check_branch
    %777 = sbr.rel (0) target = $region61
  $region60: #{decoder_forward.1} parent=0 // pred_region
    _
  $region61: #{decoder_forward.1} parent=0 // pred_fallthru
    _

</llo_original>
